<compile_context>
chip_gen: v5e
topology: v5e:2x2
jax: 0.10.0
libtpu: 0.0.40
codegen_flags: <defaults>
</compile_context>

<pallas_src>
import functools

import jax
import jax.numpy as jnp
from jax.experimental import pallas as pl
from jax.experimental.pallas import tpu as pltpu


# ----------------------------------------------------------------------------
# helpers
# ----------------------------------------------------------------------------
def _round_up(x, m):
    return (x + m - 1) // m * m


def _vmem_cap_bytes():
    try:
        info = pltpu.get_tpu_info()
        cap = int(getattr(info, "vmem_capacity_bytes", 0) or 0)
    except Exception:
        cap = 0
    if cap <= 0:
        cap = 64 * 1024 * 1024          # unknown -> assume smallest (v7x) VMEM
    return cap


def _choose_tiles(A, H, F, itemsize):
    """Pick (TM assignment-rows per tile, TF intermediate chunk) against VMEM."""
    cap = _vmem_cap_bytes()
    budget = (cap * 3) // 4

    def fits(tm, tf):
        x_db   = 2 * tm * H * itemsize        # gathered activations (double buffered)
        out_db = 2 * tm * H * itemsize        # output block (double buffered)
        rw_db  = 2 * tm * 4                   # (TM,1) routing-weight column
        w_db   = 2 * 3 * H * tf * itemsize    # fused w1||w3 (2*tf) + w2 (tf), x2 buffers
        acc    = tm * H * 4                   # f32 accumulator scratch
        inter  = 4 * tm * tf * 4              # h (2*tf) f32 + gated/cast temporaries
        return x_db + out_db + rw_db + w_db + acc + inter <= budget

    if A <= 512:
        tm_cands = [max(8, _round_up(A, 8))]
    else:
        tm_cands = [512, 384, 256, 128]       # bigger TM -> fewer weight streams

    if F % 128 == 0:
        tf_cands = [tf for tf in range(min(F, 2048), 127, -128) if F % tf == 0]
        if not tf_cands:
            tf_cands = [F]
    else:
        tf_cands = [F]

    for tm in tm_cands:
        for tf in tf_cands:
            if fits(tm, tf):
                return tm, tf
    return tm_cands[-1], tf_cands[-1]


# ----------------------------------------------------------------------------
# Pass 1: router kernel (gate matmul + f32 softmax + top-2 + renormalize)
# ----------------------------------------------------------------------------
def _router_kernel(x_ref, wg_ref, logits_ref, idx_ref, w_ref, *, num_experts):
    x = x_ref[...]                                   # (TM, H) native dtype
    wg = wg_ref[...]                                 # (H, E)  native dtype

    logits = jnp.dot(x, wg, preferred_element_type=jnp.float32)   # (TM, E) f32
    logits_ref[...] = logits.astype(logits_ref.dtype)

    # softmax in f32 (matches F.softmax(dtype=torch.float))
    lmax = jnp.max(logits, axis=-1, keepdims=True)
    ex = jnp.exp(logits - lmax)
    probs = ex / jnp.sum(ex, axis=-1, keepdims=True)

    E = num_experts
    eidx = jax.lax.broadcasted_iota(jnp.int32, probs.shape, 1)     # (TM, E)

    # top-1 (tie-break = first occurrence), then mask it out and take top-2
    v1 = jnp.max(probs, axis=-1, keepdims=True)
    i1 = jnp.min(jnp.where(probs >= v1, eidx, E), axis=-1, keepdims=True)
    masked = jnp.where(eidx == i1, -jnp.inf, probs)
    v2 = jnp.max(masked, axis=-1, keepdims=True)
    i2 = jnp.min(jnp.where(masked >= v2, eidx, E), axis=-1, keepdims=True)

    denom = v1 + v2
    idx_ref[...] = jnp.concatenate([i1, i2], axis=-1).astype(jnp.int32)     # (TM, 2)
    w_ref[...] = (jnp.concatenate([v1, v2], axis=-1) / denom).astype(jnp.float32)


# ----------------------------------------------------------------------------
# Pass 2: grouped expert kernel.  grid = (assignment-row tiles, F chunks)
# ----------------------------------------------------------------------------
def _expert_kernel(te_ref, tr_ref, x_ref, rw_ref, w13_ref, w2_ref,
                   out_ref, acc_ref, *, tf):
    t = pl.program_id(0)
    f = pl.program_id(1)
    nf = pl.num_programs(1)

    @pl.when(f == 0)
    def _init():
        acc_ref[...] = jnp.zeros_like(acc_ref)

    # Skip the MXU work entirely for trailing all-padding tiles.
    @pl.when(tr_ref[t] > 0)
    def _compute():
        x = x_ref[...]                                # (TM, H)    native dtype
        w13 = w13_ref[0, 0]                           # (H, 2*TF)  fused w1 || w3
        h = jnp.dot(x, w13, preferred_element_type=jnp.float32)    # (TM, 2*TF) f32
        h1 = h[:, :tf]
        h3 = h[:, tf:]
        g = (h1 * jax.nn.sigmoid(h1)) * h3            # SiLU gate, f32
        acc_ref[...] += jnp.dot(g.astype(w2_ref.dtype), w2_ref[0],
                                preferred_element_type=jnp.float32)

    @pl.when(f == nf - 1)
    def _store():
        # apply the per-row routing weight once, on the (TM,H) accumulator
        out_ref[...] = (acc_ref[...] * rw_ref[...]).astype(out_ref.dtype)


# ----------------------------------------------------------------------------
# Wrapper: router -> token grouping (sort/gather) -> grouped experts -> combine
# ----------------------------------------------------------------------------
def mixtral_moe_pallas(hidden_states, gate_w, w1, w3, w2, *, top_k=2):
    """hidden_states: [B,S,H]; gate_w: [H,E]; w1,w3: [E,H,F]; w2: [E,F,H].

    Returns (final_hidden_states [B*S, H], router_logits [B*S, E]) matching the
    PyTorch MixtralSparseMoeBlock.forward return values.
    """
    assert top_k == 2, "kernel top-k selection is specialized to Mixtral's top_k=2"
    B, S, H = hidden_states.shape
    T = B * S
    E, _, F = w1.shape
    dtype = hidden_states.dtype
    itemsize = jnp.dtype(w1.dtype).itemsize
    x = hidden_states.reshape(T, H)

    vmem_limit = min((_vmem_cap_bytes() * 9) // 10, 128 * 1024 * 1024)

    # ------------------------- pass 1: router -------------------------------
    TMr = min(256, max(8, _round_up(T, 8)))
    Tp = _round_up(T, TMr)
    x_r = jnp.pad(x, ((0, Tp - T), (0, 0))) if Tp != T else x
    ntr = Tp // TMr

    logits_p, top_idx_p, top_w_p = pl.pallas_call(
        functools.partial(_router_kernel, num_experts=E),
        out_shape=(
            jax.ShapeDtypeStruct((Tp, E), dtype),            # router_logits
            jax.ShapeDtypeStruct((Tp, top_k), jnp.int32),    # selected experts
            jax.ShapeDtypeStruct((Tp, top_k), jnp.float32),  # renormalized weights
        ),
        grid_spec=pltpu.PrefetchScalarGridSpec(
            num_scalar_prefetch=0,
            grid=(ntr,),
            in_specs=[
                pl.BlockSpec((TMr, H), lambda i: (i, 0)),
                pl.BlockSpec((H, E), lambda i: (0, 0)),
            ],
            out_specs=(
                pl.BlockSpec((TMr, E), lambda i: (i, 0)),
                pl.BlockSpec((TMr, top_k), lambda i: (i, 0)),
                pl.BlockSpec((TMr, top_k), lambda i: (i, 0)),
            ),
        ),
        compiler_params=pltpu.CompilerParams(
            dimension_semantics=("parallel",),
            vmem_limit_bytes=vmem_limit,
        ),
    )(x_r, gate_w)
    logits = logits_p[:T]
    top_idx = top_idx_p[:T]
    top_w = top_w_p[:T]

    # --------------- token grouping (sort assignments by expert) ------------
    K = top_k
    A = T * K
    TM, TF = _choose_tiles(A, H, F, itemsize)
    nf = F // TF
    last_f = nf - 1

    flat_e = top_idx.reshape(A)
    flat_w = top_w.reshape(A)
    flat_t = jnp.arange(A, dtype=jnp.int32) // K          # token of each assignment

    order = jnp.argsort(flat_e, stable=True)              # sorted pos -> flat index
    sorted_e = flat_e[order]
    sorted_t = flat_t[order]
    sorted_w = flat_w[order]

    g = jnp.zeros((E,), jnp.int32).at[flat_e].add(1)      # tokens per expert
    g_pad = ((g + TM - 1) // TM) * TM                     # each group padded to TM
    p_end = jnp.cumsum(g_pad)
    p_start = p_end - g_pad
    s_start = jnp.cumsum(g) - g

    a_idx = jnp.arange(A, dtype=jnp.int32)
    pad_pos = p_start[sorted_e] + (a_idx - s_start[sorted_e])   # padded row per assignment

    nz = min(E, A)
    A_pad = _round_up(A + nz * (TM - 1), TM)               # static upper bound, TM-aligned
    num_tiles = A_pad // TM

    row_token = jnp.zeros((A_pad,), jnp.int32).at[pad_pos].set(sorted_t)
    row_w = jnp.zeros((A_pad,), jnp.float32).at[pad_pos].set(sorted_w)
    row_valid = jnp.zeros((A_pad,), jnp.int32).at[pad_pos].set(1)

    tile_rows = jnp.sum(row_valid.reshape(num_tiles, TM), axis=1).astype(jnp.int32)
    tile_start = jnp.arange(num_tiles, dtype=jnp.int32) * TM
    raw_expert = jnp.searchsorted(p_end, tile_start, side="right").astype(jnp.int32)
    last_used = jnp.max(jnp.where(g > 0, jnp.arange(E, dtype=jnp.int32), 0))
    # padding tiles point at the last used expert so their weight block index
    # matches the previous grid step's block (no extra weight DMA).
    tile_expert = jnp.where(tile_rows > 0, jnp.minimum(raw_expert, E - 1), last_used)

    x_sorted = jnp.take(x, row_token, axis=0)              # (A_pad, H) gather
    rw_col = row_w[:, None]                                 # (A_pad, 1)

    # fused w1 || w3 per F-chunk: (E, nf, H, 2*TF).  In a real model this would
    # be done once at weight-load time.
    w13 = jnp.concatenate(
        [w1.reshape(E, H, nf, TF).transpose(0, 2, 1, 3),
         w3.reshape(E, H, nf, TF).transpose(0, 2, 1, 3)], axis=-1)

    # ---------------------- pass 2: grouped experts --------------------------
    def w13_map(t, f, te, tr):
        ff = jnp.where(tr[t] > 0, f, last_f)    # padding tiles: reuse previous block
        return (te[t], ff, 0, 0)

    def w2_map(t, f, te, tr):
        ff = jnp.where(tr[t] > 0, f, last_f)
        return (te[t], ff, 0)

    y = pl.pallas_call(
        functools.partial(_expert_kernel, tf=TF),
        out_shape=jax.ShapeDtypeStruct((A_pad, H), dtype),
        grid_spec=pltpu.PrefetchScalarGridSpec(
            num_scalar_prefetch=2,
            grid=(num_tiles, nf),
            in_specs=[
                pl.BlockSpec((TM, H), lambda t, f, te, tr: (t, 0)),      # gathered x
                pl.BlockSpec((TM, 1), lambda t, f, te, tr: (t, 0)),      # routing weights
                pl.BlockSpec((1, 1, H, 2 * TF), w13_map),                # fused w1||w3
                pl.BlockSpec((1, TF, H), w2_map),                        # w2
            ],
            out_specs=pl.BlockSpec((TM, H), lambda t, f, te, tr: (t, 0)),
            scratch_shapes=[pltpu.VMEM((TM, H), jnp.float32)],           # f32 accumulator
        ),
        compiler_params=pltpu.CompilerParams(
            dimension_semantics=("parallel", "arbitrary"),
            vmem_limit_bytes=vmem_limit,
        ),
    )(tile_expert, tile_rows, x_sorted, rw_col, w13, w2)

    # ------------- combine: un-sort + sum the top_k contributions -----------
    flat_pad_pos = jnp.zeros((A,), jnp.int32).at[order].set(pad_pos)
    pos = flat_pad_pos.reshape(T, K)
    out = jnp.sum(jnp.take(y, pos, axis=0).astype(jnp.float32), axis=1).astype(dtype)

    return out, logits


# ----------------------------------------------------------------------------
# Pure-JAX reference mirroring the PyTorch forward
# ----------------------------------------------------------------------------
def mixtral_moe_ref(hidden_states, gate_w, w1, w3, w2, *, top_k=2):
    B, S, H = hidden_states.shape
    x = hidden_states.reshape(-1, H).astype(jnp.float32)
    logits = x @ gate_w.astype(jnp.float32)                        # [T, E]
    probs = jax.nn.softmax(logits, axis=-1)
    topv, topi = jax.lax.top_k(probs, top_k)                       # [T, k]
    topv = topv / jnp.sum(topv, axis=-1, keepdims=True)
    E = gate_w.shape[1]
    ew = jnp.zeros((x.shape[0], E), jnp.float32)
    for k in range(top_k):
        ew = ew + jax.nn.one_hot(topi[:, k], E, dtype=jnp.float32) * topv[:, k:k + 1]
    out = jnp.zeros_like(x)
    for e in range(E):
        h1 = x @ w1[e].astype(jnp.float32)
        h3 = x @ w3[e].astype(jnp.float32)
        ye = (jax.nn.silu(h1) * h3) @ w2[e].astype(jnp.float32)
        out = out + ew[:, e:e + 1] * ye
    return out.astype(hidden_states.dtype), logits.astype(hidden_states.dtype)


if __name__ == "__main__":
    # config: hidden_size=4, intermediate_size=8, num_local_experts=4, top_k=2
    H, F, E, TOPK = 4, 8, 4, 2

    key = jax.random.PRNGKey(0)
    k_x, k_g, k_w1, k_w3, k_w2 = jax.random.split(key, 5)

    gate_w = jax.random.normal(k_g, (H, E), dtype=jnp.float32) * 0.5
    w1 = jax.random.normal(k_w1, (E, H, F), dtype=jnp.float32) * 0.5
    w3 = jax.random.normal(k_w3, (E, H, F), dtype=jnp.float32) * 0.5
    w2 = jax.random.normal(k_w2, (E, F, H), dtype=jnp.float32) * 0.5

    # (B, S) cases: one aligned, one exercising the token-padding path
    for (B, S) in ((2, 8), (3, 5)):
        kx = jax.random.fold_in(k_x, B * 100 + S)
        hidden_states = jax.random.normal(kx, (B, S, H), dtype=jnp.float32)

        out, logits = mixtral_moe_pallas(hidden_states, gate_w, w1, w3, w2, top_k=TOPK)
        out = jax.block_until_ready(out)
        logits = jax.block_until_ready(logits)

        ref_out, ref_logits = mixtral_moe_ref(hidden_states, gate_w, w1, w3, w2, top_k=TOPK)

        T = B * S
        assert out.shape == (T, H) and logits.shape == (T, E)
        assert jnp.allclose(logits, ref_logits, atol=1e-5, rtol=1e-5)
        assert jnp.allclose(out, ref_out, atol=1e-4, rtol=1e-4)

    print("KERNEL_OK")
</pallas_src>

<mosaic_0001>
module attributes {stable_mosaic.version = 11 : i64} {
  func.func @_router_kernel(%arg0: i32, %arg1: memref<16x4xf32, #tpu.memory_space<vmem>>, %arg2: memref<4x4xf32, #tpu.memory_space<vmem>>, %arg3: memref<16x4xf32, #tpu.memory_space<vmem>>, %arg4: memref<16x2xi32, #tpu.memory_space<vmem>>, %arg5: memref<16x2xf32, #tpu.memory_space<vmem>>) attributes {dimension_semantics = [#tpu.dimension_semantics<parallel>], iteration_bounds = array<i64: 1>, scalar_prefetch = 0 : i64, scratch_operands = 0 : i64, tpu.core_type = #tpu.core_type<tc>, window_params = [{transform_indices = @transform_0, window_bounds = array<i64: 16, 4>}, {pipeline_mode = #tpu.pipeline_mode<synchronous>, transform_indices = @transform_1, window_bounds = array<i64: 4, 4>}, {transform_indices = @transform_2, window_bounds = array<i64: 16, 4>}, {transform_indices = @transform_3, window_bounds = array<i64: 16, 2>}, {transform_indices = @transform_4, window_bounds = array<i64: 16, 2>}]} {
    %c0 = arith.constant 0 : index
    %c0_0 = arith.constant 0 : index
    %0 = vector.load %arg1[%c0, %c0_0] : memref<16x4xf32, #tpu.memory_space<vmem>>, vector<16x4xf32>
    %c0_1 = arith.constant 0 : index
    %c0_2 = arith.constant 0 : index
    %1 = vector.load %arg2[%c0_1, %c0_2] : memref<4x4xf32, #tpu.memory_space<vmem>>, vector<4x4xf32>
    %cst = arith.constant dense<0.000000e+00> : vector<16x4xf32>
    %2 = tpu.matmul %0, %1, %cst {dimension_numbers = #tpu.dot_dimension_numbers<[1], [0], [0], [1], [0, 0, 1, 1], [], []>} : vector<16x4xf32>, vector<4x4xf32>, vector<16x4xf32> -> vector<16x4xf32>
    %c0_3 = arith.constant 0 : index
    %c0_4 = arith.constant 0 : index
    %3 = vector.load %arg3[%c0_3, %c0_4] : memref<16x4xf32, #tpu.memory_space<vmem>>, vector<16x4xf32>
    tpu.vector_store %arg3[%c0_3, %c0_4], %2 {strides = array<i32>} : memref<16x4xf32, #tpu.memory_space<vmem>>, vector<16x4xf32>,
    %cst_5 = arith.constant dense<0xFF800000> : vector<16xf32>
    %4 = vector.multi_reduction <maximumf>, %2, %cst_5 [1] : vector<16x4xf32> to vector<16xf32>
    %5 = vector.shape_cast %4 : vector<16xf32> to vector<16x1xf32>
    %6 = vector.broadcast %5 : vector<16x1xf32> to vector<16x4xf32>
    %7 = arith.subf %2, %6 : vector<16x4xf32>
    %8 = math.exp %7 : vector<16x4xf32>
    %cst_6 = arith.constant dense<0.000000e+00> : vector<16xf32>
    %9 = vector.multi_reduction <add>, %8, %cst_6 [1] : vector<16x4xf32> to vector<16xf32>
    %10 = vector.shape_cast %9 : vector<16xf32> to vector<16x1xf32>
    %11 = vector.broadcast %10 : vector<16x1xf32> to vector<16x4xf32>
    %12 = arith.divf %8, %11 : vector<16x4xf32>
    %13 = tpu.iota {dimensions = array<i32: 1>} : vector<16x4xi32>
    %cst_7 = arith.constant dense<0xFF800000> : vector<16xf32>
    %14 = vector.multi_reduction <maximumf>, %12, %cst_7 [1] : vector<16x4xf32> to vector<16xf32>
    %15 = vector.shape_cast %14 : vector<16xf32> to vector<16x1xf32>
    %16 = vector.broadcast %15 : vector<16x1xf32> to vector<16x4xf32>
    %17 = arith.cmpf oge, %12, %16 : vector<16x4xf32>
    %c4_i32 = arith.constant 4 : i32
    %18 = vector.broadcast %c4_i32 : i32 to vector<16x4xi32>
    %19 = arith.select %17, %13, %18 : vector<16x4xi1>, vector<16x4xi32>
    %cst_8 = arith.constant dense<2147483647> : vector<16xi32>
    %20 = vector.multi_reduction <minsi>, %19, %cst_8 [1] : vector<16x4xi32> to vector<16xi32>
    %21 = vector.shape_cast %20 : vector<16xi32> to vector<16x1xi32>
    %22 = vector.broadcast %21 : vector<16x1xi32> to vector<16x4xi32>
    %23 = arith.cmpi eq, %13, %22 : vector<16x4xi32>
    %cst_9 = arith.constant 0xFF800000 : f32
    %24 = vector.broadcast %cst_9 : f32 to vector<16x4xf32>
    %25 = arith.select %23, %24, %12 : vector<16x4xi1>, vector<16x4xf32>
    %cst_10 = arith.constant dense<0xFF800000> : vector<16xf32>
    %26 = vector.multi_reduction <maximumf>, %25, %cst_10 [1] : vector<16x4xf32> to vector<16xf32>
    %27 = vector.shape_cast %26 : vector<16xf32> to vector<16x1xf32>
    %28 = vector.broadcast %27 : vector<16x1xf32> to vector<16x4xf32>
    %29 = arith.cmpf oge, %25, %28 : vector<16x4xf32>
    %c4_i32_11 = arith.constant 4 : i32
    %30 = vector.broadcast %c4_i32_11 : i32 to vector<16x4xi32>
    %31 = arith.select %29, %13, %30 : vector<16x4xi1>, vector<16x4xi32>
    %cst_12 = arith.constant dense<2147483647> : vector<16xi32>
    %32 = vector.multi_reduction <minsi>, %31, %cst_12 [1] : vector<16x4xi32> to vector<16xi32>
    %33 = vector.shape_cast %32 : vector<16xi32> to vector<16x1xi32>
    %34 = arith.addf %15, %27 : vector<16x1xf32>
    %35 = tpu.concatenate %21, %33 in 1 : vector<16x1xi32>, vector<16x1xi32> -> vector<16x2xi32>
    %c0_13 = arith.constant 0 : index
    %c0_14 = arith.constant 0 : index
    %36 = vector.load %arg4[%c0_13, %c0_14] : memref<16x2xi32, #tpu.memory_space<vmem>>, vector<16x2xi32>
    tpu.vector_store %arg4[%c0_13, %c0_14], %35 {strides = array<i32>} : memref<16x2xi32, #tpu.memory_space<vmem>>, vector<16x2xi32>,
    %37 = tpu.concatenate %15, %27 in 1 : vector<16x1xf32>, vector<16x1xf32> -> vector<16x2xf32>
    %38 = vector.broadcast %34 : vector<16x1xf32> to vector<16x2xf32>
    %39 = arith.divf %37, %38 : vector<16x2xf32>
    %c0_15 = arith.constant 0 : index
    %c0_16 = arith.constant 0 : index
    %40 = vector.load %arg5[%c0_15, %c0_16] : memref<16x2xf32, #tpu.memory_space<vmem>>, vector<16x2xf32>
    tpu.vector_store %arg5[%c0_15, %c0_16], %39 {strides = array<i32>} : memref<16x2xf32, #tpu.memory_space<vmem>>, vector<16x2xf32>,
    return
  }
  func.func @transform_0(%arg0: i32) -> (i32, i32) {
    %c0_i32 = arith.constant 0 : i32
    %c0_i32_0 = arith.constant 0 : i32
    return %arg0, %c0_i32 : i32, i32
  }
  func.func @transform_1(%arg0: i32) -> (i32, i32) {
    %c0_i32 = arith.constant 0 : i32
    %c0_i32_0 = arith.constant 0 : i32
    %c0_i32_1 = arith.constant 0 : i32
    return %c0_i32, %c0_i32_0 : i32, i32
  }
  func.func @transform_2(%arg0: i32) -> (i32, i32) {
    %c0_i32 = arith.constant 0 : i32
    %c0_i32_0 = arith.constant 0 : i32
    return %arg0, %c0_i32 : i32, i32
  }
  func.func @transform_3(%arg0: i32) -> (i32, i32) {
    %c0_i32 = arith.constant 0 : i32
    %c0_i32_0 = arith.constant 0 : i32
    return %arg0, %c0_i32 : i32, i32
  }
  func.func @transform_4(%arg0: i32) -> (i32, i32) {
    %c0_i32 = arith.constant 0 : i32
    %c0_i32_0 = arith.constant 0 : i32
    return %arg0, %c0_i32 : i32, i32
  }
}

</mosaic_0001>

<llo_original>
// kernel: tpu_custom_call.1
$region0: #{tpu_custom_call.1}
  #allocation0 [shape = 'u32[]', space=smem, size = 0x4, offset = 0x4, fixed_abs, tag = 'smem constant byte address 0x4 - core index']
  #allocation1 [shape = 'u32[72,128]{1,0:T(1,128)}', space=vmem, size = 0x9000, scoped, tag = 'internal scratch']
  %s0 = inlined_call_operand.vmem [shape: f32[16,4], index: 0, kind: input, shape index: {}]
  %s1 = inlined_call_operand.vmem [shape: f32[4,4], index: 1, kind: input, shape index: {}]
  %s2 = inlined_call_operand.vmem [shape: f32[16,4], index: 2, kind: output, shape index: {0}]
  %s3 = inlined_call_operand.vmem [shape: s32[16,2], index: 3, kind: output, shape index: {1}]
  %s4 = inlined_call_operand.vmem [shape: f32[16,2], index: 4, kind: output, shape index: {2}]
  %5 = xla_tuple %s2, %s3, %s4
  %s6 = sld [smem:[#allocation0]]
  $region34: #{tpu_custom_call.1} parent=0
    _
  %s8 = ssub.s32 1, %s6
  %s9 = scalar_select 0, %s8, %s6
  // Predicated region
  $region2: #{tpu_custom_call.1} parent=0 // pred_check
    _
  $region3: #{tpu_custom_call.1} parent=0 // pred_check_branch
    %11 = sbr.rel (0) target = $region5
  $region4: #{tpu_custom_call.1} parent=0 // pred_region
    _
  $region5: #{tpu_custom_call.1} parent=0 // pred_fallthru
    _
  // Predicated region
  $region6: #{tpu_custom_call.1} parent=0 // pred_check
    _
  $region7: #{tpu_custom_call.1} parent=0 // pred_check_branch
    %13 = sbr.rel (0) target = $region9
  $region8: #{tpu_custom_call.1} parent=0 // pred_region
    _
  $region9: #{tpu_custom_call.1} parent=0 // pred_fallthru
    _
  %v14 = vld [vmem:[%s0] sm:$0xff]
  %v15 = vld [vmem:[%s0 + $0x8] sm:$0xff]
  %v16 = vld [vmem:[%s1] sm:$0xf]
  %vm17 = vcmask 31744
  %v19 = vsel %vm17, %v14, 0
  %v22 = vsel %vm17, %v15, 0
  %vm24 = vcmask 1043456
  %v26 = vsel %vm24, %v16, 0
  %28 = vmatpush.msra.mxu0 0.0
  %29 = vmatpush.msra.mxu0 0.0
  %30 = vmatpush.msra.mxu0 0.0
  %31 = vmatpush.msra.mxu0 0.0
  %32 = vmatpush.msra.mxu0 0.0
  %33 = vmatpush.msra.mxu0 0.0
  %34 = vmatpush.msra.mxu0 0.0
  %35 = vmatpush.msra.mxu0 0.0
  %36 = vmatpush.msra.mxu0 0.0
  %37 = vmatpush.msra.mxu0 0.0
  %38 = vmatpush.msra.mxu0 0.0
  %39 = vmatpush.msra.mxu0 0.0
  %40 = vmatpush.msra.mxu0 0.0
  %41 = vmatpush.msra.mxu0 0.0
  %42 = vmatpush.msra.mxu0 0.0
  %43 = vmatpush.msra.mxu0 %v26
  %44 = vmatmul.f32.gmra.mxu0 %v19
  %v45 = vpop.f32.mrf.mxu0
  %v46 = vadd.f32 0.0, %v45
  %47 = vmatmul.f32.gmra.mxu0 %v22
  %v48 = vpop.f32.mrf.mxu0
  %v49 = vadd.f32 0.0, %v48
  %50 = vdwg.mxu0
  %51 = vst.msk [vmem:[%s2] sm:$0xff] %vm17, %v46
  %52 = vst.msk [vmem:[%s2 + $0x8] sm:$0xff] %vm17, %v49
  %v53 = vsel %vm17, %v46, -inf
  %54 = vmax.xlane.f32.xlu0 %v53
  %v55 = vpop.xlane.xlu0 %54
  %v56 = vsel %vm17, %v49, -inf
  %57 = vmax.xlane.f32.xlu0 %v56
  %v58 = vpop.xlane.xlu0 %57
  %v59 = vsub.f32 %v46, %v55
  %v60 = vsub.f32 %v49, %v58
  %v61 = vmul.f32 %v59, 1.442695
  %v62 = vpow.pop %v61
  %v63 = vmul.f32 %v60, 1.442695
  %v64 = vpow.pop %v63
  %v65 = vsel %vm17, %v62, 0.0
  %66 = vadd.xlane.f32.xlu0 %v65
  %v67 = vpop.xlane.xlu0 %66
  %v68 = vsel %vm17, %v64, 0.0
  %69 = vadd.xlane.f32.xlu0 %v68
  %v70 = vpop.xlane.xlu0 %69
  %v71 = vrcp.pop %v67
  %v72 = vmul.f32 %v67, %v71
  %v73 = vsub.f32 1.0, %v72
  %v74 = vmul.f32 %v71, %v73
  %v75 = vadd.f32 %v71, %v74
  %vm76 = vweird.f32 %v67
  %vm77 = vweird.f32 %v71
  %vm78 = vmor %vm76, %vm77
  %v79 = vsel %vm78, %v71, %v75
  %v80 = vand.u32 2147483647, %v67
  %vm81 = vcmp.eq.f32.partialorder %v80, 8.507059e+37
  %v82 = vand.u32 %v67, 2147483648
  %v83 = vor.u32 1.1754944e-38, %v82
  %v84 = vsel %vm81, %v83, %v79
  %v85 = vmul.f32 %v62, %v84
  %v86 = vrcp.pop %v70
  %v87 = vmul.f32 %v70, %v86
  %v88 = vsub.f32 1.0, %v87
  %v89 = vmul.f32 %v86, %v88
  %v90 = vadd.f32 %v86, %v89
  %vm91 = vweird.f32 %v70
  %vm92 = vweird.f32 %v86
  %vm93 = vmor %vm91, %vm92
  %v94 = vsel %vm93, %v86, %v90
  %v95 = vand.u32 2147483647, %v70
  %vm96 = vcmp.eq.f32.partialorder %v95, 8.507059e+37
  %v97 = vand.u32 %v70, 2147483648
  %v98 = vor.u32 1.1754944e-38, %v97
  %v99 = vsel %vm96, %v98, %v94
  %v100 = vmul.f32 %v64, %v99
  %v101 = vlaneseq
  %v102 = vand.u32 %v101, 127
  %v103 = vsel %vm17, %v85, -inf
  %104 = vmax.xlane.f32.xlu0 %v103
  %v105 = vpop.xlane.xlu0 %104
  %v106 = vsel %vm17, %v100, -inf
  %107 = vmax.xlane.f32.xlu0 %v106
  %v108 = vpop.xlane.xlu0 %107
  %vm109 = vcmp.ge.f32.partialorder %v85, %v105
  %vm110 = vcmp.ge.f32.partialorder %v100, %v108
  %v111 = vsel %vm109, %v102, 4
  %v112 = vsel %vm110, %v102, 4
  %v113 = vsel %vm17, %v111, 2147483647
  %v114 = vand.u32 %v113, 65535
  %v115 = vshra.s32 %v113, 16
  %v116 = vcvt.s32.f32 %v114
  %v117 = vcvt.s32.f32 %v115
  %118 = vmin.xlane.f32.xlu0 %v117
  %v119 = vpop.xlane.xlu0 %118
  %vm120 = vcmp.eq.f32.partialorder %v117, %v119
  %v121 = vsel %vm120, %v116, inf
  %122 = vmin.xlane.f32.xlu0 %v121
  %v123 = vpop.xlane.xlu0 %122
  %v124 = vcvt.f32.s32 %v123
  %v125 = vcvt.f32.s32 %v119
  %v126 = vshll.u32 %v125, 16
  %v127 = vadd.s32 %v126, %v124
  %v128 = vsel %vm17, %v112, 2147483647
  %v129 = vand.u32 %v128, 65535
  %v130 = vshra.s32 %v128, 16
  %v131 = vcvt.s32.f32 %v129
  %v132 = vcvt.s32.f32 %v130
  %133 = vmin.xlane.f32.xlu0 %v132
  %v134 = vpop.xlane.xlu0 %133
  %vm135 = vcmp.eq.f32.partialorder %v132, %v134
  %v136 = vsel %vm135, %v131, inf
  %137 = vmin.xlane.f32.xlu0 %v136
  %v138 = vpop.xlane.xlu0 %137
  %v139 = vcvt.f32.s32 %v138
  %v140 = vcvt.f32.s32 %v134
  %v141 = vshll.u32 %v140, 16
  %v142 = vadd.s32 %v141, %v139
  %vm143 = vcmp.eq.s32.totalorder %v102, %v127
  %vm144 = vcmp.eq.s32.totalorder %v102, %v142
  %v145 = vsel %vm143, -inf, %v85
  %v146 = vsel %vm144, -inf, %v100
  %v147 = vsel %vm17, %v145, -inf
  %148 = vmax.xlane.f32.xlu0 %v147
  %v149 = vpop.xlane.xlu0 %148
  %v150 = vsel %vm17, %v146, -inf
  %151 = vmax.xlane.f32.xlu0 %v150
  %v152 = vpop.xlane.xlu0 %151
  %vm153 = vcmp.ge.f32.partialorder %v145, %v149
  %vm154 = vcmp.ge.f32.partialorder %v146, %v152
  %v155 = vsel %vm153, %v102, 4
  %v156 = vsel %vm154, %v102, 4
  %v157 = vsel %vm17, %v155, 2147483647
  %v158 = vand.u32 %v157, 65535
  %v159 = vshra.s32 %v157, 16
  %v160 = vcvt.s32.f32 %v158
  %v161 = vcvt.s32.f32 %v159
  %162 = vmin.xlane.f32.xlu0 %v161
  %v163 = vpop.xlane.xlu0 %162
  %vm164 = vcmp.eq.f32.partialorder %v161, %v163
  %v165 = vsel %vm164, %v160, inf
  %166 = vmin.xlane.f32.xlu0 %v165
  %v167 = vpop.xlane.xlu0 %166
  %v168 = vcvt.f32.s32 %v167
  %v169 = vcvt.f32.s32 %v163
  %v170 = vshll.u32 %v169, 16
  %v171 = vadd.s32 %v170, %v168
  %v172 = vsel %vm17, %v156, 2147483647
  %v173 = vand.u32 %v172, 65535
  %v174 = vshra.s32 %v172, 16
  %v175 = vcvt.s32.f32 %v173
  %v176 = vcvt.s32.f32 %v174
  %177 = vmin.xlane.f32.xlu0 %v176
  %v178 = vpop.xlane.xlu0 %177
  %vm179 = vcmp.eq.f32.partialorder %v176, %v178
  %v180 = vsel %vm179, %v175, inf
  %181 = vmin.xlane.f32.xlu0 %v180
  %v182 = vpop.xlane.xlu0 %181
  %v183 = vcvt.f32.s32 %v182
  %v184 = vcvt.f32.s32 %v178
  %v185 = vshll.u32 %v184, 16
  %v186 = vadd.s32 %v185, %v183
  %v187 = vadd.f32 %v105, %v149
  %v188 = vadd.f32 %v108, %v152
  %vm189 = vcmask 7168
  %v190 = vsel %vm189, %v127, %v171
  %v191 = vsel %vm189, %v142, %v186
  %vm192 = vcmask 15360
  %193 = vst.msk [vmem:[%s3] sm:$0xff] %vm192, %v190
  %194 = vst.msk [vmem:[%s3 + $0x8] sm:$0xff] %vm192, %v191
  %v195 = vsel %vm189, %v105, %v149
  %v196 = vsel %vm189, %v108, %v152
  %v197 = vrcp.pop %v187
  %v198 = vmul.f32 %v187, %v197
  %v199 = vsub.f32 1.0, %v198
  %v200 = vmul.f32 %v197, %v199
  %v201 = vadd.f32 %v197, %v200
  %vm202 = vweird.f32 %v187
  %vm203 = vweird.f32 %v197
  %vm204 = vmor %vm202, %vm203
  %v205 = vsel %vm204, %v197, %v201
  %v206 = vand.u32 2147483647, %v187
  %vm207 = vcmp.eq.f32.partialorder %v206, 8.507059e+37
  %v208 = vand.u32 %v187, 2147483648
  %v209 = vor.u32 1.1754944e-38, %v208
  %v210 = vsel %vm207, %v209, %v205
  %v211 = vmul.f32 %v195, %v210
  %v212 = vrcp.pop %v188
  %v213 = vmul.f32 %v188, %v212
  %v214 = vsub.f32 1.0, %v213
  %v215 = vmul.f32 %v212, %v214
  %v216 = vadd.f32 %v212, %v215
  %vm217 = vweird.f32 %v188
  %vm218 = vweird.f32 %v212
  %vm219 = vmor %vm217, %vm218
  %v220 = vsel %vm219, %v212, %v216
  %v221 = vand.u32 2147483647, %v188
  %vm222 = vcmp.eq.f32.partialorder %v221, 8.507059e+37
  %v223 = vand.u32 %v188, 2147483648
  %v224 = vor.u32 1.1754944e-38, %v223
  %v225 = vsel %vm222, %v224, %v220
  %v226 = vmul.f32 %v196, %v225
  %227 = vst.msk [vmem:[%s4] sm:$0xff] %vm192, %v211
  %228 = vst.msk [vmem:[%s4 + $0x8] sm:$0xff] %vm192, %v226
  // Predicated region
  $region10: #{tpu_custom_call.1} parent=0 // pred_check
    _
  $region11: #{tpu_custom_call.1} parent=0 // pred_check_branch
    %230 = sbr.rel (0) target = $region13
  $region12: #{tpu_custom_call.1} parent=0 // pred_region
    _
  $region13: #{tpu_custom_call.1} parent=0 // pred_fallthru
    _
  // Predicated region
  $region14: #{tpu_custom_call.1} parent=0 // pred_check
    _
  $region15: #{tpu_custom_call.1} parent=0 // pred_check_branch
    %232 = sbr.rel (0) target = $region17
  $region16: #{tpu_custom_call.1} parent=0 // pred_region
    _
  $region17: #{tpu_custom_call.1} parent=0 // pred_fallthru
    _
  // Predicated region
  $region18: #{tpu_custom_call.1} parent=0 // pred_check
    _
  $region19: #{tpu_custom_call.1} parent=0 // pred_check_branch
    %234 = sbr.rel (0) target = $region21
  $region20: #{tpu_custom_call.1} parent=0 // pred_region
    _
  $region21: #{tpu_custom_call.1} parent=0 // pred_fallthru
    _
  // Predicated region
  $region22: #{tpu_custom_call.1} parent=0 // pred_check
    _
  $region23: #{tpu_custom_call.1} parent=0 // pred_check_branch
    %236 = sbr.rel (0) target = $region25
  $region24: #{tpu_custom_call.1} parent=0 // pred_region
    _
  $region25: #{tpu_custom_call.1} parent=0 // pred_fallthru
    _
  // Predicated region
  $region26: #{tpu_custom_call.1} parent=0 // pred_check
    _
  $region27: #{tpu_custom_call.1} parent=0 // pred_check_branch
    %238 = sbr.rel (0) target = $region29
  $region28: #{tpu_custom_call.1} parent=0 // pred_region
    _
  $region29: #{tpu_custom_call.1} parent=0 // pred_fallthru
    _
  // Predicated region
  $region30: #{tpu_custom_call.1} parent=0 // pred_check
    _
  $region31: #{tpu_custom_call.1} parent=0 // pred_check_branch
    %240 = sbr.rel (0) target = $region33
  $region32: #{tpu_custom_call.1} parent=0 // pred_region
    _
  $region33: #{tpu_custom_call.1} parent=0 // pred_fallthru
    _

</llo_original>
